<compile_context>
chip_gen: v7x
topology: tpu7x:2x2x1
jax: 0.10.0
libtpu: 0.0.40
codegen_flags: <defaults>
</compile_context>

<pallas_src>
import functools

import jax
import jax.numpy as jnp
from jax.experimental import pallas as pl
from jax.experimental.pallas import tpu as pltpu


# ---------------------------------------------------------------------------
# Helpers
# ---------------------------------------------------------------------------

def _device_budgets():
    """(per-block byte budget, scoped VMEM limit) derived from the device."""
    try:
        cap = int(pltpu.get_tpu_info().vmem_capacity_bytes)
    except Exception:
        cap = 64 * 1024 * 1024  # conservative fallback (v7x-class)
    if cap <= 64 * 1024 * 1024:
        # v7x: 64 MiB physical VMEM per core -> leave compiler headroom.
        return 10 * 1024 * 1024, 52 * 1024 * 1024
    # v5e / v6e: 128 MiB physical VMEM -> use well above the 32 MiB default.
    return 16 * 1024 * 1024, 96 * 1024 * 1024


def _sublane(dtype):
    return {4: 8, 2: 16, 1: 32}.get(jnp.dtype(dtype).itemsize, 8)


def _largest_divisor(n, cap, multiple=1):
    """Largest divisor of n that is <= cap, preferring multiples of `multiple`."""
    cap = max(1, min(n, cap))
    fallback = 1
    for d in range(cap, 0, -1):
        if n % d:
            continue
        if d % multiple == 0:
            return d
        if fallback == 1:
            fallback = d
    return fallback


def _gate(means, w1t_ref, ba_ref, w2t_ref, b2_ref):
    """conv1(1x1) -> PReLU -> conv2(1x1) -> sigmoid on per-batch channel means."""
    # ba_ref row 0 = conv1 bias, row 1 = PReLU per-channel slope.
    h = jnp.dot(means, w1t_ref[...], preferred_element_type=jnp.float32) + ba_ref[0:1, :]
    h = jnp.where(h > 0, h, ba_ref[1:2, :] * h)
    g = jnp.dot(h, w2t_ref[...], preferred_element_type=jnp.float32) + b2_ref[...]
    return jax.nn.sigmoid(g)


# ---------------------------------------------------------------------------
# Kernels
# ---------------------------------------------------------------------------

def _fused_kernel(x_ref, w1t_ref, ba_ref, w2t_ref, b2_ref, o_ref, *, inv_hw):
    """Single pass: avg-pool + gate MLP + broadcast multiply for Nb whole batches."""
    x = x_ref[...]                                              # (Nb, C, HW) native dtype
    # f32-accumulating sum over the lane axis; no full-block f32 copy of x.
    means = jnp.sum(x, axis=2, dtype=jnp.float32) * inv_hw      # (Nb, C)
    g = _gate(means, w1t_ref, ba_ref, w2t_ref, b2_ref)          # (Nb, C) f32
    # Mem-bound multiply/store stays in the native dtype.
    o_ref[...] = x * g.astype(x.dtype)[:, :, None]


def _reduce_gate_kernel(x_ref, w1t_ref, ba_ref, w2t_ref, b2_ref, g_ref, acc_ref,
                        *, inv_hw):
    """Two-pass, pass 1: accumulate per-(N, C) sums over HW tiles, then gate MLP."""
    h_idx = pl.program_id(1)

    @pl.when(h_idx == 0)
    def _init():
        acc_ref[...] = jnp.zeros_like(acc_ref)

    acc_ref[...] += jnp.sum(x_ref[...], axis=2, dtype=jnp.float32)   # (Nb1, C)

    @pl.when(h_idx == pl.num_programs(1) - 1)
    def _finalize():
        means = acc_ref[...] * inv_hw                                # global 1/(H*W)
        g_ref[...] = _gate(means, w1t_ref, ba_ref, w2t_ref, b2_ref)[:, None, :]


def _scale_kernel(x_ref, g_ref, o_ref):
    """Two-pass, pass 2: lane-dense broadcast multiply on the (N*C, HW) layout."""
    x = x_ref[...]                                               # (Rb, hwt) native dtype
    o_ref[...] = x * g_ref[...].astype(x.dtype)                  # g: (Rb, 1) f32


# ---------------------------------------------------------------------------
# Wrapper
# ---------------------------------------------------------------------------

def channel_attention(x_nchw, w1, b1, alpha, w2, b2, *, block_budget_bytes=None):
    """x_nchw: (N, C, H, W); w1: (C//r, C); b1, alpha: (C//r,); w2: (C, C//r); b2: (C,)."""
    N, C, H, W = x_nchw.shape
    Cr = w1.shape[0]
    HW = H * W
    dtype = x_nchw.dtype
    itemsize = jnp.dtype(dtype).itemsize

    budget, vmem_cap = _device_budgets()
    if block_budget_bytes is not None:
        budget = int(block_budget_bytes)

    x3 = x_nchw.reshape(N, C, HW)
    inv_hw = float(1.0 / HW)
    per_batch_bytes = C * HW * itemsize

    # Tiny gate-path parameters (f32): transposed weights, packed bias/alpha.
    w1t = jnp.asarray(w1, jnp.float32).T                          # (C, Cr)
    w2t = jnp.asarray(w2, jnp.float32).T                          # (Cr, C)
    ba = jnp.stack([jnp.asarray(b1, jnp.float32),
                    jnp.asarray(alpha, jnp.float32)], axis=0)     # (2, Cr)
    b2r = jnp.asarray(b2, jnp.float32).reshape(1, C)              # (1, C)
    param_bytes = 4 * (w1t.size + w2t.size + ba.size + b2r.size)

    param_specs = [
        pl.BlockSpec((C, Cr), lambda *_: (0, 0)),                 # conv1 weight^T
        pl.BlockSpec((2, Cr), lambda *_: (0, 0)),                 # [conv1 bias; PReLU alpha]
        pl.BlockSpec((Cr, C), lambda *_: (0, 0)),                 # conv2 weight^T
        pl.BlockSpec((1, C), lambda *_: (0, 0)),                  # conv2 bias
    ]

    # ---------------- Path A: fused single pass (whole batches fit VMEM) ----
    if per_batch_bytes <= budget:
        # Keep >= min(N, 4) grid steps so the pipeline can overlap DMA with
        # compute and v7x can shard the "parallel" axis over both TensorCores.
        min_steps = min(N, 4)
        Nb = 1
        for d in range(N, 0, -1):
            if N % d == 0 and d * per_batch_bytes <= budget and (N // d) >= min_steps:
                Nb = d
                break
        block_bytes = Nb * per_batch_bytes
        vmem_limit = int(min(vmem_cap,
                             max(16 * 1024 * 1024,
                                 4 * block_bytes + 2 * param_bytes + (4 << 20))))

        out = pl.pallas_call(
            functools.partial(_fused_kernel, inv_hw=inv_hw),
            out_shape=jax.ShapeDtypeStruct((N, C, HW), dtype),
            grid_spec=pltpu.PrefetchScalarGridSpec(
                num_scalar_prefetch=0,
                grid=(N // Nb,),
                in_specs=[pl.BlockSpec((Nb, C, HW), lambda n: (n, 0, 0))] + param_specs,
                out_specs=pl.BlockSpec((Nb, C, HW), lambda n: (n, 0, 0)),
            ),
            compiler_params=pltpu.CompilerParams(
                dimension_semantics=("parallel",),
                vmem_limit_bytes=vmem_limit,
            ),
            cost_estimate=pl.CostEstimate(
                flops=2 * N * C * HW + 4 * N * C * Cr,
                transcendentals=N * C,
                bytes_accessed=2 * N * C * HW * itemsize,
            ),
            input_output_aliases={0: 0},   # output reuses x's HBM buffer
        )(x3, w1t, ba, w2t, b2r)
        return out.reshape(N, C, H, W)

    # ---------------- Path B: two passes (large H*W, HW-tiled) --------------
    # Pass 1: per-(N, C) spatial sums over an "arbitrary" HW reduction axis,
    # gate MLP fused into the finalize step.  One batch per block keeps the
    # accumulator tiny; HW tiles are large multiples of 128.
    hwt1 = _largest_divisor(HW, cap=max(128, budget // (C * itemsize)), multiple=128)
    block1_bytes = C * hwt1 * itemsize
    vmem1 = int(min(vmem_cap,
                    max(16 * 1024 * 1024,
                        4 * block1_bytes + 2 * param_bytes + (4 << 20))))

    gates = pl.pallas_call(
        functools.partial(_reduce_gate_kernel, inv_hw=inv_hw),
        out_shape=jax.ShapeDtypeStruct((N, 1, C), jnp.float32),
        grid_spec=pltpu.PrefetchScalarGridSpec(
            num_scalar_prefetch=0,
            grid=(N, HW // hwt1),
            in_specs=[pl.BlockSpec((1, C, hwt1), lambda n, h: (n, 0, h))] + param_specs,
            out_specs=pl.BlockSpec((1, 1, C), lambda n, h: (n, 0, 0)),
            scratch_shapes=[pltpu.VMEM((1, C), jnp.float32)],
        ),
        compiler_params=pltpu.CompilerParams(
            dimension_semantics=("parallel", "arbitrary"),
            vmem_limit_bytes=vmem1,
        ),
        cost_estimate=pl.CostEstimate(
            flops=N * C * HW + 4 * N * C * Cr,
            transcendentals=N * C,
            bytes_accessed=N * C * HW * itemsize + 4 * N * C,
        ),
    )(x3, w1t, ba, w2t, b2r)

    # Pass 2: dense 2-D (N*C, HW) layout -> sublane-dense rows even for small C,
    # lane-dense HW tiles (multiples of 128) -> unmasked vector stores.
    R = N * C
    x2 = x3.reshape(R, HW)
    g2 = gates.reshape(R, 1)
    sub = _sublane(dtype)

    hwt2 = _largest_divisor(HW, cap=max(512, budget // (sub * itemsize)), multiple=128)
    Rb = _largest_divisor(R, cap=max(sub, budget // (hwt2 * itemsize)), multiple=sub)
    block2_bytes = Rb * hwt2 * itemsize
    vmem2 = int(min(vmem_cap,
                    max(16 * 1024 * 1024, 4 * block2_bytes + (4 << 20))))

    out = pl.pallas_call(
        _scale_kernel,
        out_shape=jax.ShapeDtypeStruct((R, HW), dtype),
        grid_spec=pltpu.PrefetchScalarGridSpec(
            num_scalar_prefetch=0,
            grid=(R // Rb, HW // hwt2),
            in_specs=[
                pl.BlockSpec((Rb, hwt2), lambda r, h: (r, h)),
                pl.BlockSpec((Rb, 1), lambda r, h: (r, 0)),
            ],
            out_specs=pl.BlockSpec((Rb, hwt2), lambda r, h: (r, h)),
        ),
        compiler_params=pltpu.CompilerParams(
            dimension_semantics=("parallel", "parallel"),
            vmem_limit_bytes=vmem2,
        ),
        cost_estimate=pl.CostEstimate(
            flops=N * C * HW,
            transcendentals=0,
            bytes_accessed=2 * N * C * HW * itemsize + 4 * R,
        ),
        input_output_aliases={0: 0},   # output reuses x's HBM buffer
    )(x2, g2)
    return out.reshape(N, C, H, W)


# ---------------------------------------------------------------------------
# Pure-JAX reference (matches the PyTorch forward)
# ---------------------------------------------------------------------------

def channel_attention_ref(x, w1, b1, alpha, w2, b2):
    s = jnp.mean(x, axis=(2, 3), keepdims=True)                       # avg pool
    s = jnp.einsum('oc,ncij->noij', w1, s) + b1.reshape(1, -1, 1, 1)  # conv1 1x1
    s = jnp.where(s > 0, s, alpha.reshape(1, -1, 1, 1) * s)           # PReLU
    s = jnp.einsum('oc,ncij->noij', w2, s) + b2.reshape(1, -1, 1, 1)  # conv2 1x1
    s = jax.nn.sigmoid(s)
    return x * s


if __name__ == "__main__":
    def make_inputs(key, N, C, H, W, reduction=2):
        Cr = C // reduction
        kx, k1, kb1, k2, kb2 = jax.random.split(key, 5)
        x = jax.random.normal(kx, (N, C, H, W), dtype=jnp.float32)
        w1 = jax.random.normal(k1, (Cr, C), dtype=jnp.float32) * 0.5   # conv1.weight (1x1)
        b1 = jax.random.normal(kb1, (Cr,), dtype=jnp.float32) * 0.1    # conv1.bias
        alpha = jnp.full((Cr,), 0.1, dtype=jnp.float32)                 # PReLU init=0.1
        w2 = jax.random.normal(k2, (C, Cr), dtype=jnp.float32) * 0.5    # conv2.weight
        b2 = jax.random.normal(kb2, (C,), dtype=jnp.float32) * 0.1      # conv2.bias
        return x, w1, b1, alpha, w2, b2

    key = jax.random.PRNGKey(0)
    k_a, k_b = jax.random.split(key)

    # Test 1: toy size -> fused single-pass kernel, grid=(2,) over batch.
    args = make_inputs(k_a, 2, 4, 16, 16)
    out = channel_attention(*args)
    jax.block_until_ready(out)
    ref = channel_attention_ref(*args)
    assert out.shape == ref.shape and out.dtype == ref.dtype
    assert jnp.allclose(out, ref, atol=1e-5, rtol=1e-5), "fused path mismatch"

    # Test 2: force the two-pass (HW-tiled reduce + lane-dense scale) path by
    # shrinking the block budget; validates the large-feature-map structure.
    args = make_inputs(k_b, 2, 8, 32, 32)
    out = channel_attention(*args, block_budget_bytes=16 * 1024)
    jax.block_until_ready(out)
    ref = channel_attention_ref(*args)
    assert out.shape == ref.shape and out.dtype == ref.dtype
    assert jnp.allclose(out, ref, atol=1e-5, rtol=1e-5), "two-pass path mismatch"

    print("KERNEL_OK")
</pallas_src>

<mosaic_0001>
module attributes {stable_mosaic.version = 11 : i64} {
  func.func @_fused_kernel(%arg0: i32, %arg1: memref<1x4x256xf32, #tpu.memory_space<vmem>>, %arg2: memref<4x2xf32, #tpu.memory_space<vmem>>, %arg3: memref<2x2xf32, #tpu.memory_space<vmem>>, %arg4: memref<2x4xf32, #tpu.memory_space<vmem>>, %arg5: memref<1x4xf32, #tpu.memory_space<vmem>>, %arg6: memref<1x4x256xf32, #tpu.memory_space<vmem>>) attributes {dimension_semantics = [#tpu.dimension_semantics<parallel>], iteration_bounds = array<i64: 2>, scalar_prefetch = 0 : i64, scratch_operands = 0 : i64, tpu.core_type = #tpu.core_type<tc>, window_params = [{transform_indices = @transform_0, window_bounds = array<i64: 1, 4, 256>}, {pipeline_mode = #tpu.pipeline_mode<synchronous>, transform_indices = @transform_1, window_bounds = array<i64: 4, 2>}, {pipeline_mode = #tpu.pipeline_mode<synchronous>, transform_indices = @transform_2, window_bounds = array<i64: 2, 2>}, {pipeline_mode = #tpu.pipeline_mode<synchronous>, transform_indices = @transform_3, window_bounds = array<i64: 2, 4>}, {pipeline_mode = #tpu.pipeline_mode<synchronous>, transform_indices = @transform_4, window_bounds = array<i64: 1, 4>}, {transform_indices = @transform_5, window_bounds = array<i64: 1, 4, 256>}]} {
    %c0 = arith.constant 0 : index
    %c0_0 = arith.constant 0 : index
    %c0_1 = arith.constant 0 : index
    %0 = vector.load %arg1[%c0, %c0_0, %c0_1] : memref<1x4x256xf32, #tpu.memory_space<vmem>>, vector<1x4x256xf32>
    %cst = arith.constant dense<0.000000e+00> : vector<1x4xf32>
    %1 = vector.multi_reduction <add>, %0, %cst [2] : vector<1x4x256xf32> to vector<1x4xf32>
    %cst_2 = arith.constant 3.906250e-03 : f32
    %2 = vector.broadcast %cst_2 : f32 to vector<1x4xf32>
    %3 = arith.mulf %1, %2 : vector<1x4xf32>
    %c0_3 = arith.constant 0 : index
    %c0_4 = arith.constant 0 : index
    %4 = vector.load %arg2[%c0_3, %c0_4] : memref<4x2xf32, #tpu.memory_space<vmem>>, vector<4x2xf32>
    %cst_5 = arith.constant dense<0.000000e+00> : vector<1x2xf32>
    %5 = tpu.matmul %3, %4, %cst_5 {dimension_numbers = #tpu.dot_dimension_numbers<[1], [0], [0], [1], [0, 0, 1, 1], [], []>} : vector<1x4xf32>, vector<4x2xf32>, vector<1x2xf32> -> vector<1x2xf32>
    %c0_6 = arith.constant 0 : index
    %c0_7 = arith.constant 0 : index
    %6 = vector.load %arg3[%c0_6, %c0_7] : memref<2x2xf32, #tpu.memory_space<vmem>>, vector<1x2xf32>
    %7 = arith.addf %5, %6 : vector<1x2xf32>
    %cst_8 = arith.constant 0.000000e+00 : f32
    %8 = vector.broadcast %cst_8 : f32 to vector<1x2xf32>
    %9 = arith.cmpf ogt, %7, %8 : vector<1x2xf32>
    %c1 = arith.constant 1 : index
    %c0_9 = arith.constant 0 : index
    %10 = vector.load %arg3[%c1, %c0_9] : memref<2x2xf32, #tpu.memory_space<vmem>>, vector<1x2xf32>
    %11 = arith.mulf %10, %7 : vector<1x2xf32>
    %12 = arith.select %9, %7, %11 : vector<1x2xi1>, vector<1x2xf32>
    %c0_10 = arith.constant 0 : index
    %c0_11 = arith.constant 0 : index
    %13 = vector.load %arg4[%c0_10, %c0_11] : memref<2x4xf32, #tpu.memory_space<vmem>>, vector<2x4xf32>
    %cst_12 = arith.constant dense<0.000000e+00> : vector<1x4xf32>
    %14 = tpu.matmul %12, %13, %cst_12 {dimension_numbers = #tpu.dot_dimension_numbers<[1], [0], [0], [1], [0, 0, 1, 1], [], []>} : vector<1x2xf32>, vector<2x4xf32>, vector<1x4xf32> -> vector<1x4xf32>
    %c0_13 = arith.constant 0 : index
    %c0_14 = arith.constant 0 : index
    %15 = vector.load %arg5[%c0_13, %c0_14] : memref<1x4xf32, #tpu.memory_space<vmem>>, vector<1x4xf32>
    %16 = arith.addf %14, %15 : vector<1x4xf32>
    %17 = arith.negf %16 : vector<1x4xf32>
    %18 = math.exp %17 : vector<1x4xf32>
    %cst_15 = arith.constant 1.000000e+00 : f32
    %19 = vector.broadcast %cst_15 : f32 to vector<1x4xf32>
    %20 = arith.addf %19, %18 : vector<1x4xf32>
    %21 = arith.divf %19, %20 : vector<1x4xf32>
    %22 = vector.shape_cast %21 : vector<1x4xf32> to vector<1x4x1xf32>
    %23 = vector.broadcast %22 : vector<1x4x1xf32> to vector<1x4x256xf32>
    %24 = arith.mulf %0, %23 : vector<1x4x256xf32>
    %c0_16 = arith.constant 0 : index
    %c0_17 = arith.constant 0 : index
    %c0_18 = arith.constant 0 : index
    %25 = vector.load %arg6[%c0_16, %c0_17, %c0_18] : memref<1x4x256xf32, #tpu.memory_space<vmem>>, vector<1x4x256xf32>
    tpu.vector_store %arg6[%c0_16, %c0_17, %c0_18], %24 {strides = array<i32>} : memref<1x4x256xf32, #tpu.memory_space<vmem>>, vector<1x4x256xf32>,
    return
  }
  func.func @transform_0(%arg0: i32) -> (i32, i32, i32) {
    %c0_i32 = arith.constant 0 : i32
    %c0_i32_0 = arith.constant 0 : i32
    %c0_i32_1 = arith.constant 0 : i32
    return %arg0, %c0_i32, %c0_i32_0 : i32, i32, i32
  }
  func.func @transform_1(%arg0: i32) -> (i32, i32) {
    %c0_i32 = arith.constant 0 : i32
    %c0_i32_0 = arith.constant 0 : i32
    %c0_i32_1 = arith.constant 0 : i32
    return %c0_i32, %c0_i32_0 : i32, i32
  }
  func.func @transform_2(%arg0: i32) -> (i32, i32) {
    %c0_i32 = arith.constant 0 : i32
    %c0_i32_0 = arith.constant 0 : i32
    %c0_i32_1 = arith.constant 0 : i32
    return %c0_i32, %c0_i32_0 : i32, i32
  }
  func.func @transform_3(%arg0: i32) -> (i32, i32) {
    %c0_i32 = arith.constant 0 : i32
    %c0_i32_0 = arith.constant 0 : i32
    %c0_i32_1 = arith.constant 0 : i32
    return %c0_i32, %c0_i32_0 : i32, i32
  }
  func.func @transform_4(%arg0: i32) -> (i32, i32) {
    %c0_i32 = arith.constant 0 : i32
    %c0_i32_0 = arith.constant 0 : i32
    %c0_i32_1 = arith.constant 0 : i32
    return %c0_i32, %c0_i32_0 : i32, i32
  }
  func.func @transform_5(%arg0: i32) -> (i32, i32, i32) {
    %c0_i32 = arith.constant 0 : i32
    %c0_i32_0 = arith.constant 0 : i32
    %c0_i32_1 = arith.constant 0 : i32
    return %arg0, %c0_i32, %c0_i32_0 : i32, i32, i32
  }
}

</mosaic_0001>

<llo_original>
// kernel: tpu_custom_call.1
$region0: #{tpu_custom_call.1}
  #allocation0 [shape = 'u32[]', space=smem, size = 0x4, offset = 0x4, fixed_abs, tag = 'smem constant byte address 0x4 - core index']
  #allocation1 [shape = 'u32[144,128]{1,0:T(1,128)}', space=vmem, size = 0x12000, scoped, tag = 'internal scratch']
  %s0 = inlined_call_operand.hbm [shape: f32[2,4,256], index: 0, kind: input, shape index: {}, may-alias: {0,5}]
  %s1 = inlined_call_operand.vmem [shape: f32[4,2], index: 1, kind: input, shape index: {}]
  %s2 = inlined_call_operand.vmem [shape: f32[2,2], index: 2, kind: input, shape index: {}]
  %s3 = inlined_call_operand.vmem [shape: f32[2,4], index: 3, kind: input, shape index: {}]
  %s4 = inlined_call_operand.vmem [shape: f32[1,4], index: 4, kind: input, shape index: {}]
  %s5 = inlined_call_operand.hbm [shape: f32[2,4,256], index: 5, kind: output, shape index: {}, may-alias: {0,5}]
  %s6 = sld [smem:[#allocation0]]
  $region57: #{tpu_custom_call.1} parent=0
    _
  %s8 = ssub.s32 1, %s6
  %s9 = scalar_select 0, %s8, %s6
  $region1: #{tpu_custom_call.1} parent=0
    #allocation2 [shape = 'u8[8192]{0}', space=vmem, size = 0x2000, scoped, tag = 'input window, operand 0']
    #allocation3 [shape = 's32[2]{0}', space=sflag, size = 0x8, scoped, tag = 'scoped memory for tpu_custom_call.1']
    #allocation4 [shape = 's32[2]{0}', space=sflag, size = 0x8, scoped, tag = 'scoped memory for tpu_custom_call.1']
    #allocation5 [shape = 'u8[8192]{0}', space=vmem, size = 0x2000, scoped, tag = 'output window, operand 0']
    %10 = vsyncpa [#allocation3], 0
    %s11 = scalar_lea.sflag [#allocation3], 1
    %12 = vsyncpa %s11, 0
    %13 = vsyncpa [#allocation4], 0
    %s14 = scalar_lea.sflag [#allocation4], 1
    %15 = vsyncpa %s14, 0
    loop: start=0, step=1, limit=4
    $region2: #{tpu_custom_call.1} parent=1 // loop_pre_header
      _
    $region3: #{tpu_custom_call.1} parent=1 // loop_header
      %s17 = sphi 0, %s21
      %p18 = scmp.ge.s32.totalorder %s17, 4
      %s27 = sphi 0, %s29
      %s30 = sphi 0, %s27
      %s31 = sphi 0, %s30
      %s47 = sphi 0, %s31
      %s51 = sphi 0, %s51
      %s53 = sphi 0, %s51
      %s54 = sphi 0, %s53
      %s68 = sphi 0, %s54
      %s72 = sphi 0, %s72
      %s74 = sphi 0, %s72
      %s75 = sphi 0, %s74
      %s89 = sphi 0, %s75
      %s93 = sphi 0, %s93
      %s95 = sphi 0, %s93
      %s96 = sphi 0, %s95
      %s110 = sphi 0, %s96
      %s114 = sphi 0, %s114
      %s116 = sphi 0, %s114
      %s117 = sphi 0, %s116
      %s131 = sphi 0, %s117
      %s137 = sphi 0, %s139
      %s140 = sphi 0, %s137
      %s141 = sphi 0, %s140
      %s157 = sphi 0, %s141
    $region4: #{tpu_custom_call.1} parent=1 // loop_header_branch
      %20 = sbr.rel (%p18) target = $region8
    $region5: #{tpu_custom_call.1} parent=1 // loop_body
      %s22 = ssub.s32 %s17, 1
      %s23 = ssub.s32 %s17, 2
      %s24 = sadd.s32 %s17, 1
      %s25 = ssub.s32 %s17, %s24
      %p26 = scmp.eq.s32.totalorder %s25, 0
      %s28 = sadd.s32 %s27, 1
      %s29 = scalar_select %p26, %s27, %s28
      %p32 = pneg %p26
      %p33 = scmp.eq.s32.totalorder %s17, 1
      %p34 = por %p32, %p33
      %p35 = scmp.ne.s32.totalorder %s27, %s30
      %p36 = scmp.eq.s32.totalorder %s17, 0
      %p37 = por %p35, %p36
      %p38 = scmp.ne.s32.totalorder %s27, %s30
      %p39 = scmp.eq.s32.totalorder %s22, 1
      %p40 = por %p38, %p39
      %p41 = scmp.ne.s32.totalorder %s30, %s31
      %p42 = scmp.eq.s32.totalorder %s22, 0
      %p43 = por %p41, %p42
      %p44 = scmp.ne.s32.totalorder %s30, %s31
      %p45 = scmp.eq.s32.totalorder %s23, 1
      %p46 = por %p44, %p45
      %p48 = scmp.ne.s32.totalorder %s31, %s47
      %p49 = scmp.eq.s32.totalorder %s23, 0
      %p50 = por %p48, %p49
      %s52 = sadd.s32 %s51, 1
      %p55 = scmp.eq.s32.totalorder %s17, 1
      %p56 = scmp.ne.s32.totalorder %s51, %s53
      %p57 = scmp.eq.s32.totalorder %s17, 0
      %p58 = por %p56, %p57
      %p59 = scmp.ne.s32.totalorder %s51, %s53
      %p60 = scmp.eq.s32.totalorder %s22, 1
      %p61 = por %p59, %p60
      %p62 = scmp.ne.s32.totalorder %s53, %s54
      %p63 = scmp.eq.s32.totalorder %s22, 0
      %p64 = por %p62, %p63
      %p65 = scmp.ne.s32.totalorder %s53, %s54
      %p66 = scmp.eq.s32.totalorder %s23, 1
      %p67 = por %p65, %p66
      %p69 = scmp.ne.s32.totalorder %s54, %s68
      %p70 = scmp.eq.s32.totalorder %s23, 0
      %p71 = por %p69, %p70
      %s73 = sadd.s32 %s72, 1
      %p76 = scmp.eq.s32.totalorder %s17, 1
      %p77 = scmp.ne.s32.totalorder %s72, %s74
      %p78 = scmp.eq.s32.totalorder %s17, 0
      %p79 = por %p77, %p78
      %p80 = scmp.ne.s32.totalorder %s72, %s74
      %p81 = scmp.eq.s32.totalorder %s22, 1
      %p82 = por %p80, %p81
      %p83 = scmp.ne.s32.totalorder %s74, %s75
      %p84 = scmp.eq.s32.totalorder %s22, 0
      %p85 = por %p83, %p84
      %p86 = scmp.ne.s32.totalorder %s74, %s75
      %p87 = scmp.eq.s32.totalorder %s23, 1
      %p88 = por %p86, %p87
      %p90 = scmp.ne.s32.totalorder %s75, %s89
      %p91 = scmp.eq.s32.totalorder %s23, 0
      %p92 = por %p90, %p91
      %s94 = sadd.s32 %s93, 1
      %p97 = scmp.eq.s32.totalorder %s17, 1
      %p98 = scmp.ne.s32.totalorder %s93, %s95
      %p99 = scmp.eq.s32.totalorder %s17, 0
      %p100 = por %p98, %p99
      %p101 = scmp.ne.s32.totalorder %s93, %s95
      %p102 = scmp.eq.s32.totalorder %s22, 1
      %p103 = por %p101, %p102
      %p104 = scmp.ne.s32.totalorder %s95, %s96
      %p105 = scmp.eq.s32.totalorder %s22, 0
      %p106 = por %p104, %p105
      %p107 = scmp.ne.s32.totalorder %s95, %s96
      %p108 = scmp.eq.s32.totalorder %s23, 1
      %p109 = por %p107, %p108
      %p111 = scmp.ne.s32.totalorder %s96, %s110
      %p112 = scmp.eq.s32.totalorder %s23, 0
      %p113 = por %p111, %p112
      %s115 = sadd.s32 %s114, 1
      %p118 = scmp.eq.s32.totalorder %s17, 1
      %p119 = scmp.ne.s32.totalorder %s114, %s116
      %p120 = scmp.eq.s32.totalorder %s17, 0
      %p121 = por %p119, %p120
      %p122 = scmp.ne.s32.totalorder %s114, %s116
      %p123 = scmp.eq.s32.totalorder %s22, 1
      %p124 = por %p122, %p123
      %p125 = scmp.ne.s32.totalorder %s116, %s117
      %p126 = scmp.eq.s32.totalorder %s22, 0
      %p127 = por %p125, %p126
      %p128 = scmp.ne.s32.totalorder %s116, %s117
      %p129 = scmp.eq.s32.totalorder %s23, 1
      %p130 = por %p128, %p129
      %p132 = scmp.ne.s32.totalorder %s117, %s131
      %p133 = scmp.eq.s32.totalorder %s23, 0
      %p134 = por %p132, %p133
      %s135 = ssub.s32 %s17, %s24
      %p136 = scmp.eq.s32.totalorder %s135, 0
      %s138 = sadd.s32 %s137, 1
      %s139 = scalar_select %p136, %s137, %s138
      %p142 = pneg %p136
      %p143 = scmp.eq.s32.totalorder %s17, 1
      %p144 = por %p142, %p143
      %p145 = scmp.ne.s32.totalorder %s137, %s140
      %p146 = scmp.eq.s32.totalorder %s17, 0
      %p147 = por %p145, %p146
      %p148 = scmp.ne.s32.totalorder %s137, %s140
      %p149 = scmp.eq.s32.totalorder %s22, 1
      %p150 = por %p148, %p149
      %p151 = scmp.ne.s32.totalorder %s140, %s141
      %p152 = scmp.eq.s32.totalorder %s22, 0
      %p153 = por %p151, %p152
      %p154 = scmp.ne.s32.totalorder %s140, %s141
      %p155 = scmp.eq.s32.totalorder %s23, 1
      %p156 = por %p154, %p155
      %p158 = scmp.ne.s32.totalorder %s141, %s157
      %p159 = scmp.eq.s32.totalorder %s23, 0
      %p160 = por %p158, %p159
      %p161 = scmp.le.s32.totalorder 1, %s17
      %p162 = scmp.lt.s32.totalorder %s17, 3
      %p163 = pnand %p161, %p162
      %p164 = pneg %p163
      // Predicated region
      $region9: #{tpu_custom_call.1} parent=5 // pred_check
        _
      $region10: #{tpu_custom_call.1} parent=5 // pred_check_branch
        %166 = sbr.rel (%p163) target = $region12
      $region11: #{tpu_custom_call.1} parent=5 // pred_region
        %s167 = ssub.s32 %s17, 1
        // Predicated region
        $region13: #{tpu_custom_call.1} parent=11 // pred_check
          %p168 = pneg %p64
        $region14: #{tpu_custom_call.1} parent=11 // pred_check_branch
          %170 = sbr.rel (%p168) target = $region16
        $region15: #{tpu_custom_call.1} parent=11 // pred_region
          _
        $region16: #{tpu_custom_call.1} parent=11 // pred_fallthru
          _
        // Predicated region
        $region17: #{tpu_custom_call.1} parent=11 // pred_check
          %p171 = pneg %p85
        $region18: #{tpu_custom_call.1} parent=11 // pred_check_branch
          %173 = sbr.rel (%p171) target = $region20
        $region19: #{tpu_custom_call.1} parent=11 // pred_region
          _
        $region20: #{tpu_custom_call.1} parent=11 // pred_fallthru
          _
        // Predicated region
        $region21: #{tpu_custom_call.1} parent=11 // pred_check
          %p174 = pneg %p106
        $region22: #{tpu_custom_call.1} parent=11 // pred_check_branch
          %176 = sbr.rel (%p174) target = $region24
        $region23: #{tpu_custom_call.1} parent=11 // pred_region
          _
        $region24: #{tpu_custom_call.1} parent=11 // pred_fallthru
          _
        // Predicated region
        $region25: #{tpu_custom_call.1} parent=11 // pred_check
          %p177 = pneg %p127
        $region26: #{tpu_custom_call.1} parent=11 // pred_check_branch
          %179 = sbr.rel (%p177) target = $region28
        $region27: #{tpu_custom_call.1} parent=11 // pred_region
          _
        $region28: #{tpu_custom_call.1} parent=11 // pred_fallthru
          _
      $region12: #{tpu_custom_call.1} parent=5 // pred_fallthru
        _
      %p180 = scmp.lt.s32.totalorder %s17, 2
      // Predicated region
      $region29: #{tpu_custom_call.1} parent=5 // pred_check
        %p181 = pneg %p180
      $region30: #{tpu_custom_call.1} parent=5 // pred_check_branch
        %183 = sbr.rel (%p181) target = $region32
      $region31: #{tpu_custom_call.1} parent=5 // pred_region
        // Predicated region
        $region33: #{tpu_custom_call.1} parent=31 // pred_check
          %p184 = pneg %p37
        $region34: #{tpu_custom_call.1} parent=31 // pred_check_branch
          %186 = sbr.rel (%p184) target = $region36
        $region35: #{tpu_custom_call.1} parent=31 // pred_region
          %s187 = sand.u32 %s27, 1
          %s188 = scalar_lea.sflag [#allocation3], %s187
          %s189 = sand.u32 %s27, 1
          %s190 = smul.addr %s189, 8
          %s191 = scalar_lea.vmem [#allocation2], %s190
          %s193 = ssub.s32 128, 128
          %194 = vsyncadd %s188, %s193
          %s195 = smul.addr %s17, 2
          %s196 = smul.addr %s195, 64
          %s197 = scalar_lea.hbm %s0, %s196
          %s199 = sshll.u32 %s191, 4
          %s200 = int_to_ptr.vmem [resolvable:$true] %s199
          %202 = dma.hbm_to_vmem [thread:$0]  %s197, 128, %s200, %s188
        $region36: #{tpu_custom_call.1} parent=31 // pred_fallthru
          _
      $region32: #{tpu_custom_call.1} parent=5 // pred_fallthru
        _
      %p203 = scmp.le.s32.totalorder 1, %s17
      %p204 = scmp.lt.s32.totalorder %s17, 3
      %p205 = pnand %p203, %p204
      %p206 = pneg %p205
      // Predicated region
      $region37: #{tpu_custom_call.1} parent=5 // pred_check
        _
      $region38: #{tpu_custom_call.1} parent=5 // pred_check_branch
        %208 = sbr.rel (%p205) target = $region40
      $region39: #{tpu_custom_call.1} parent=5 // pred_region
        %s209 = ssub.s32 %s17, 1
        %s210 = sand.u32 %s30, 1
        %s211 = scalar_lea.sflag [#allocation3], %s210
        %s212 = sand.u32 %s30, 1
        %s213 = smul.addr %s212, 8
        %s214 = scalar_lea.vmem [#allocation2], %s213
        // Predicated region
        $region41: #{tpu_custom_call.1} parent=39 // pred_check
          %p215 = pneg %p43
        $region42: #{tpu_custom_call.1} parent=39 // pred_check_branch
          %217 = sbr.rel (%p215) target = $region44
        $region43: #{tpu_custom_call.1} parent=39 // pred_region
          %218 = dma.done %s211, 128
        $region44: #{tpu_custom_call.1} parent=39 // pred_fallthru
          _
        %s219 = sand.u32 %s30, 1
        %s220 = scalar_lea.sflag [#allocation3], %s219
        %s221 = sand.u32 %s30, 1
        %s222 = smul.addr %s221, 8
        %s223 = scalar_lea.vmem [#allocation2], %s222
        %p224 = pneg %p43
        %p225 = pneg %p40
        %p226 = pneg %p64
        %p227 = pneg %p61
        %p228 = pneg %p85
        %p229 = pneg %p82
        %p230 = pneg %p106
        %p231 = pneg %p103
        %p232 = pneg %p127
        %p233 = pneg %p124
        %p234 = pneg %p153
        %p235 = pneg %p150
        %s236 = sand.u32 %s140, 1
        %s237 = scalar_lea.sflag [#allocation4], %s236
        %s238 = sand.u32 %s140, 1
        %s239 = smul.addr %s238, 8
        %s240 = scalar_lea.vmem [#allocation5], %s239
        %v241 = vld [vmem:[%s214] sm:$0xff]
        %v243 = vcombine.high %v241, %v241
        %vm245 = vcmask 1043456
        %v246 = vsel %vm245, %v241, 0.0
        %v247 = vsel %vm245, %v243, 0.0
        %v248 = vadd.f32 %v246, %v247
        %249 = vadd.xlane.f32.xlu0 %v248
        %v250 = vpop.xlane.xlu0 %249
        %v251 = vmul.f32 %v250, 0.00390625
        %v252 = vld [vmem:[%s1] sm:$0xf]
        %v253 = vld [vmem:[%s2] sm:$0x1]
        %v255 = vlaneseq
        %v256 = vand.u32 %v255, 127
        %v257 = vlaneseq
        %v258 = vshrl.u32 %v257, 7
        %v259 = vsub.s32 %v256, %v258
        %v260 = vrot.slane %v251, %v259
        %vm261 = vcmask 31744
        %v262 = vsel %vm261, %v260, 0
        %v265 = vsel %vm245, %v252, 0
        %267 = vmatprep.subr.mxu0 0.0
        %268 = vmatpush1.msra.mxu0 %v265
        %269 = vmatprep.subr.mxu0 0.0
        %270 = vmatpush1.msra.mxu0 0.0
        %271 = vmatprep.subr.mxu0 0.0
        %272 = vmatpush1.msra.mxu0 0.0
        %273 = vmatprep.subr.mxu0 0.0
        %274 = vmatpush1.msra.mxu0 0.0
        %275 = vmatprep.subr.mxu0 0.0
        %276 = vmatpush1.msra.mxu0 0.0
        %277 = vmatprep.subr.mxu0 0.0
        %278 = vmatpush1.msra.mxu0 0.0
        %279 = vmatprep.subr.mxu0 0.0
        %280 = vmatpush1.msra.mxu0 0.0
        %281 = vmatprep.subr.mxu0 0.0
        %282 = vmatpush1.msra.mxu0 0.0
        %283 = vmatprep.subr.mxu0 0.0
        %284 = vmatpush1.msra.mxu0 0.0
        %285 = vmatprep.subr.mxu0 0.0
        %286 = vmatpush1.msra.mxu0 0.0
        %287 = vmatprep.subr.mxu0 0.0
        %288 = vmatpush1.msra.mxu0 0.0
        %289 = vmatprep.subr.mxu0 0.0
        %290 = vmatpush1.msra.mxu0 0.0
        %291 = vmatprep.subr.mxu0 0.0
        %292 = vmatpush1.msra.mxu0 0.0
        %293 = vmatprep.subr.mxu0 0.0
        %294 = vmatpush1.msra.mxu0 0.0
        %295 = vmatprep.subr.mxu0 0.0
        %296 = vmatpush1.msra.mxu0 0.0
        %297 = vmatprep.subr.mxu0 0.0
        %298 = vmatpush1.msra.mxu0 0.0
        %299 = vmatprep.subr.mxu0 0.0
        %300 = vmatpush1.msra.mxu0 0.0
        %301 = vmatprep.subr.mxu0 0.0
        %302 = vmatpush1.msra.mxu0 0.0
        %303 = vmatprep.subr.mxu0 0.0
        %304 = vmatpush1.msra.mxu0 0.0
        %305 = vmatprep.subr.mxu0 0.0
        %306 = vmatpush1.msra.mxu0 0.0
        %307 = vmatprep.subr.mxu0 0.0
        %308 = vmatpush1.msra.mxu0 0.0
        %309 = vmatprep.subr.mxu0 0.0
        %310 = vmatpush1.msra.mxu0 0.0
        %311 = vmatprep.subr.mxu0 0.0
        %312 = vmatpush1.msra.mxu0 0.0
        %313 = vmatprep.subr.mxu0 0.0
        %314 = vmatpush1.msra.mxu0 0.0
        %315 = vmatprep.subr.mxu0 0.0
        %316 = vmatpush1.msra.mxu0 0.0
        %317 = vmatprep.subr.mxu0 0.0
        %318 = vmatpush1.msra.mxu0 0.0
        %319 = vmatprep.subr.mxu0 0.0
        %320 = vmatpush1.msra.mxu0 0.0
        %321 = vmatprep.subr.mxu0 0.0
        %322 = vmatpush1.msra.mxu0 0.0
        %323 = vmatprep.subr.mxu0 0.0
        %324 = vmatpush1.msra.mxu0 0.0
        %325 = vmatprep.subr.mxu0 0.0
        %326 = vmatpush1.msra.mxu0 0.0
        %327 = vmatprep.subr.mxu0 0.0
        %328 = vmatpush1.msra.mxu0 0.0
        %329 = vmatprep.subr.mxu0 0.0
        %330 = vmatpush1.msra.mxu0 0.0
        %331 = vmatprep.mubr.f32.mxu0 0.0
        %332 = vmatmul.mubr.f32.gmra.mrb[0].mxu0 %v262
        %v333 = vpop.f32.mrb[0].mxu0
        %v334 = vadd.f32 %v253, %v333
        %v335 = vpop.f32.mrb[0].mxu0
        %336 = vdwg.mxu0
        %vm337 = vcmp.gt.f32.partialorder %v334, 0.0
        %v338 = vld [vmem:[%s2 + $0x1] sm:$0x1]
        %v339 = vmul.f32 %v338, %v334
        %v340 = vsel %vm337, %v334, %v339
        %v341 = vld [vmem:[%s3] sm:$0x3]
        %v342 = vld [vmem:[%s4] sm:$0x1]
        %vm343 = vcmask 15360
        %v345 = vsel %vm343, %v340, 0
        %vm347 = vcmask 1041408
        %v349 = vsel %vm347, %v341, 0
        %351 = vmatprep.subr.mxu0 0.0
        %352 = vmatpush1.msra.mxu0 %v349
        %353 = vmatprep.subr.mxu0 0.0
        %354 = vmatpush1.msra.mxu0 0.0
        %355 = vmatprep.subr.mxu0 0.0
        %356 = vmatpush1.msra.mxu0 0.0
        %357 = vmatprep.subr.mxu0 0.0
        %358 = vmatpush1.msra.mxu0 0.0
        %359 = vmatprep.subr.mxu0 0.0
        %360 = vmatpush1.msra.mxu0 0.0
        %361 = vmatprep.subr.mxu0 0.0
        %362 = vmatpush1.msra.mxu0 0.0
        %363 = vmatprep.subr.mxu0 0.0
        %364 = vmatpush1.msra.mxu0 0.0
        %365 = vmatprep.subr.mxu0 0.0
        %366 = vmatpush1.msra.mxu0 0.0
        %367 = vmatprep.subr.mxu0 0.0
        %368 = vmatpush1.msra.mxu0 0.0
        %369 = vmatprep.subr.mxu0 0.0
        %370 = vmatpush1.msra.mxu0 0.0
        %371 = vmatprep.subr.mxu0 0.0
        %372 = vmatpush1.msra.mxu0 0.0
        %373 = vmatprep.subr.mxu0 0.0
        %374 = vmatpush1.msra.mxu0 0.0
        %375 = vmatprep.subr.mxu0 0.0
        %376 = vmatpush1.msra.mxu0 0.0
        %377 = vmatprep.subr.mxu0 0.0
        %378 = vmatpush1.msra.mxu0 0.0
        %379 = vmatprep.subr.mxu0 0.0
        %380 = vmatpush1.msra.mxu0 0.0
        %381 = vmatprep.subr.mxu0 0.0
        %382 = vmatpush1.msra.mxu0 0.0
        %383 = vmatprep.subr.mxu0 0.0
        %384 = vmatpush1.msra.mxu0 0.0
        %385 = vmatprep.subr.mxu0 0.0
        %386 = vmatpush1.msra.mxu0 0.0
        %387 = vmatprep.subr.mxu0 0.0
        %388 = vmatpush1.msra.mxu0 0.0
        %389 = vmatprep.subr.mxu0 0.0
        %390 = vmatpush1.msra.mxu0 0.0
        %391 = vmatprep.subr.mxu0 0.0
        %392 = vmatpush1.msra.mxu0 0.0
        %393 = vmatprep.subr.mxu0 0.0
        %394 = vmatpush1.msra.mxu0 0.0
        %395 = vmatprep.subr.mxu0 0.0
        %396 = vmatpush1.msra.mxu0 0.0
        %397 = vmatprep.subr.mxu0 0.0
        %398 = vmatpush1.msra.mxu0 0.0
        %399 = vmatprep.subr.mxu0 0.0
        %400 = vmatpush1.msra.mxu0 0.0
        %401 = vmatprep.subr.mxu0 0.0
        %402 = vmatpush1.msra.mxu0 0.0
        %403 = vmatprep.subr.mxu0 0.0
        %404 = vmatpush1.msra.mxu0 0.0
        %405 = vmatprep.subr.mxu0 0.0
        %406 = vmatpush1.msra.mxu0 0.0
        %407 = vmatprep.subr.mxu0 0.0
        %408 = vmatpush1.msra.mxu0 0.0
        %409 = vmatprep.subr.mxu0 0.0
        %410 = vmatpush1.msra.mxu0 0.0
        %411 = vmatprep.subr.mxu0 0.0
        %412 = vmatpush1.msra.mxu0 0.0
        %413 = vmatprep.subr.mxu0 0.0
        %414 = vmatpush1.msra.mxu0 0.0
        %415 = vmatprep.mubr.f32.mxu0 0.0
        %416 = vmatmul.mubr.f32.gmra.mrb[0].mxu0 %v345
        %v417 = vpop.f32.mrb[0].mxu0
        %v418 = vadd.f32 %v342, %v417
        %v419 = vpop.f32.mrb[0].mxu0
        %420 = vdwg.mxu0
        %v421 = vxor.u32 %v418, 2147483648
        %v422 = vmul.f32 %v421, 1.442695
        %v423 = vpow.pop %v422
        %v424 = vadd.f32 %v423, 1.0
        %v425 = vrcp.pop %v424
        %v426 = vmul.f32 1.0, %v425
        %v427 = vlaneseq
        %v428 = vshrl.u32 %v427, 7
        %v429 = vsub.s32 0, %v428
        %v430 = vrot.slane %v426, %v429
        %432 = vbcast.lane.b32.xlu0 %v430, 256
        %v433 = vpop.permute.xlu0 %432
        %v436 = vunpack.c.l.s4 839922192
        %v437 = vunpack.c.0.s8 %v436
        %v438 = vlaneseq
        %v439 = vshrl.u32 %v438, 7
        %v440 = vsub.s32 %v437, %v439
        %v441 = vrot.slane %v433, %v440
        %v443 = vmul.f32 %v241, %v441
        %444 = vst [vmem:[%s240] sm:$0xff] %v443
        %s445 = sand.u32 %s140, 1
        %s446 = scalar_lea.sflag [#allocation4], %s445
        %s447 = sand.u32 %s140, 1
        %s448 = smul.addr %s447, 8
        %s449 = scalar_lea.vmem [#allocation5], %s448
        // Predicated region
        $region45: #{tpu_custom_call.1} parent=39 // pred_check
          %p450 = pneg %p150
        $region46: #{tpu_custom_call.1} parent=39 // pred_check_branch
          %452 = sbr.rel (%p450) target = $region48
        $region47: #{tpu_custom_call.1} parent=39 // pred_region
          %s454 = ssub.s32 128, 128
          %455 = vsyncadd %s446, %s454
          %s456 = smul.addr %s22, 2
          %s457 = smul.addr %s456, 64
          %s458 = scalar_lea.hbm %s5, %s457
          %s460 = sshll.u32 %s449, 4
          %s461 = int_to_ptr.vmem [resolvable:$true] %s460
          %463 = dma.vmem_to_hbm [thread:$0]  %s461, 128, %s458, %s446
        $region48: #{tpu_custom_call.1} parent=39 // pred_fallthru
          _
      $region40: #{tpu_custom_call.1} parent=5 // pred_fallthru
        _
      %p464 = scmp.le.s32.totalorder 2, %s17
      // Predicated region
      $region49: #{tpu_custom_call.1} parent=5 // pred_check
        %p465 = pneg %p464
      $region50: #{tpu_custom_call.1} parent=5 // pred_check_branch
        %467 = sbr.rel (%p465) target = $region52
      $region51: #{tpu_custom_call.1} parent=5 // pred_region
        %s468 = ssub.s32 %s17, 2
        // Predicated region
        $region53: #{tpu_custom_call.1} parent=51 // pred_check
          %p469 = pneg %p156
        $region54: #{tpu_custom_call.1} parent=51 // pred_check_branch
          %471 = sbr.rel (%p469) target = $region56
        $region55: #{tpu_custom_call.1} parent=51 // pred_region
          %s472 = sand.u32 %s141, 1
          %s473 = scalar_lea.sflag [#allocation4], %s472
          %s474 = sand.u32 %s141, 1
          %s475 = smul.addr %s474, 8
          %s476 = scalar_lea.vmem [#allocation5], %s475
          %477 = dma.done %s473, 128
        $region56: #{tpu_custom_call.1} parent=51 // pred_fallthru
          _
      $region52: #{tpu_custom_call.1} parent=5 // pred_fallthru
        _
    $region6: #{tpu_custom_call.1} parent=1 // loop_footer
      %s21 = sadd.s32 1, %s17
    $region7: #{tpu_custom_call.1} parent=1 // loop_footer_branch
      %16 = sbr.rel target = $region3
    $region8: #{tpu_custom_call.1} parent=1 // loop_exit
      _
    %478 = vsyncpa [#allocation3], 1
    %s479 = scalar_lea.sflag [#allocation3], 1
    %480 = vsyncpa %s479, 1
    %481 = vsyncpa [#allocation4], 1
    %s482 = scalar_lea.sflag [#allocation4], 1
    %483 = vsyncpa %s482, 1

</llo_original>
